<compile_context>
chip_gen: v6e
topology: v6e:2x2x1
jax: 0.10.0
libtpu: 0.0.40
codegen_flags: <defaults>
</compile_context>

<pallas_src>
import functools

import jax
import jax.numpy as jnp
import numpy as np
from jax import lax
from jax.experimental import pallas as pl
from jax.experimental.pallas import tpu as pltpu

EPS = 1e-5
MOMENTUM = 0.1

_MIB = 1024 * 1024
# Scoped-VMEM ceiling that is safe on every generation (v7x: 64 MiB physical,
# 32 MiB scoped default; v5e/v6e: 128 MiB physical).
_VMEM_CAP = 48 * _MIB


def _cdiv(a, b):
    return -(-a // b)


def _round_up(x, m):
    return ((x + m - 1) // m) * m


def _choose_tile_rows(rp, fp, target_block_bytes):
    """Largest multiple-of-8 row tile whose f32, lane-padded block fits the budget.

    Budgeting with 4-byte elements and 128-lane padding keeps the in-kernel f32
    working set (not just the HBM-side block) inside the VMEM limit.
    """
    fp_pad = _round_up(fp, 128)
    rows = (target_block_bytes // (fp_pad * 4)) // 8 * 8
    rows = max(8, int(rows))
    rows = min(rows, _round_up(rp, 8))
    # Keep >= 2 row tiles so the "parallel" normalize axis can engage both v7x
    # TensorCores (no-op on v5e/v6e, which have a single TC).
    if _round_up(rp, 8) > 8:
        rows = min(rows, max(8, _round_up(_cdiv(rp, 2), 8)))
    return int(rows)


# ----------------------------------------------------------------------------
# Fused path: whole slab resident in VMEM, one read + one write, one dispatch.
# ----------------------------------------------------------------------------
def _make_fused_kernel(rows):
    inv_r = 1.0 / rows

    def fused_kernel(x_ref, gamma_ref, beta_ref, o_ref, mean_ref, var_ref):
        x = x_ref[...].astype(jnp.float32)                      # (R, F)
        mean = jnp.sum(x, axis=0, keepdims=True) * inv_r        # (1, F)
        xc = x - mean
        # Centered variance: no E[x^2] - mean^2 cancellation, and it is free
        # here because x is already VMEM-resident.
        var = jnp.maximum(jnp.sum(xc * xc, axis=0, keepdims=True) * inv_r, 0.0)
        scale = gamma_ref[...] * lax.rsqrt(var + EPS)
        o_ref[...] = (xc * scale + beta_ref[...]).astype(o_ref.dtype)
        mean_ref[...] = mean
        var_ref[...] = var

    return fused_kernel


# ----------------------------------------------------------------------------
# Streaming path: stats pass (training) + single-FMA normalize pass.
# ----------------------------------------------------------------------------
def _make_stats_kernel(rows_total, tile_rows, fp, tiles_per_core, needs_mask):
    def stats_kernel(x_ref, sum_ref, sumsq_ref):
        c = pl.program_id(0)
        i = pl.program_id(1)

        @pl.when(i == 0)
        def _():
            sum_ref[...] = jnp.zeros_like(sum_ref)
            sumsq_ref[...] = jnp.zeros_like(sumsq_ref)

        x = x_ref[...].astype(jnp.float32)

        def accumulate(xv):
            # (tile_rows, fp) -> (tile_rows//8, 8, fp): VPU-only vreg adds; the
            # single cross-sublane reduction happens once, in the JAX epilogue.
            x3 = xv.reshape(tile_rows // 8, 8, fp)
            sum_ref[...] += jnp.sum(x3, axis=0)
            sumsq_ref[...] += jnp.sum(x3 * x3, axis=0)

        if not needs_mask:
            accumulate(x)
        else:
            # Valid rows for this (possibly tail / overflow) tile.  Overflow
            # steps (odd tile count split across cores) get valid <= 0 and
            # contribute exactly zero.
            valid = rows_total - (c * tiles_per_core + i) * tile_rows

            @pl.when(valid >= tile_rows)
            def _():
                accumulate(x)

            @pl.when(valid < tile_rows)
            def _():
                row_ids = lax.broadcasted_iota(jnp.int32, (tile_rows, fp), 0)
                accumulate(jnp.where(row_ids < valid, x, 0.0))

    return stats_kernel


def _norm_kernel(x_ref, scale_ref, bias_ref, o_ref):
    tr, fp = x_ref.shape
    # scale/bias come in as a full native (8, fp) tile; broadcasting it over the
    # leading axis of the (tr//8, 8, fp) view is a pure vreg-by-vreg FMA.
    x = x_ref[...].astype(jnp.float32).reshape(tr // 8, 8, fp)
    y = x * scale_ref[...] + bias_ref[...]
    o_ref[...] = y.reshape(tr, fp).astype(o_ref.dtype)
    # NOTE: the tail tile reads/writes past Rp; Pallas blocked specs pad reads
    # and discard out-of-bounds writes, so no masking is needed here.


@functools.partial(
    jax.jit, static_argnames=("training", "target_block_bytes", "fuse_max_bytes"))
def custom_batch_norm(x, gamma, beta, running_mean, running_var, *,
                      training=True,
                      target_block_bytes=6 * _MIB,
                      fuse_max_bytes=6 * _MIB):
    """Forward of CustomBatchNorm. Returns (out, new_running_mean, new_running_var)."""
    B, N1, N2, F = x.shape
    R = B * N1 * N2

    gamma_f = gamma.astype(jnp.float32)
    beta_f = beta.astype(jnp.float32)

    # -------------------- fused single-kernel training path --------------------
    slab_padded_f32 = _round_up(R, 8) * _round_up(F, 128) * 4
    if training and slab_padded_f32 <= fuse_max_bytes:
        x2d = x.reshape(R, F)
        vmem_limit = int(min(_VMEM_CAP,
                             max(16 * _MIB, 6 * slab_padded_f32 + 2 * _MIB)))
        out2d, mean1, var1 = pl.pallas_call(
            _make_fused_kernel(R),
            out_shape=(
                jax.ShapeDtypeStruct((R, F), x.dtype),
                jax.ShapeDtypeStruct((1, F), jnp.float32),
                jax.ShapeDtypeStruct((1, F), jnp.float32),
            ),
            compiler_params=pltpu.CompilerParams(vmem_limit_bytes=vmem_limit),
        )(x2d, gamma_f.reshape(1, F), beta_f.reshape(1, F))
        mean = mean1.reshape(F)
        var = var1.reshape(F)
        new_rm = (1.0 - MOMENTUM) * running_mean + MOMENTUM * mean
        new_rv = (1.0 - MOMENTUM) * running_var + MOMENTUM * var
        return out2d.reshape(B, N1, N2, F), new_rm, new_rv

    # ------------------------------ streaming path ------------------------------
    # Lane packing: fold k rows into the lane axis when F < 128 so vregs/stores
    # are lane-dense (Fp == 128 for F == 32).  Free contiguous row-major reshape.
    if F < 128 and 128 % F == 0 and R % (128 // F) == 0:
        k = 128 // F
    else:
        k = 1
    Fp = k * F
    Rp = R // k
    xp = x.reshape(Rp, Fp)

    tile_rows = _choose_tile_rows(Rp, Fp, target_block_bytes)
    num_tiles = _cdiv(Rp, tile_rows)
    block_f32_bytes = tile_rows * _round_up(Fp, 128) * 4
    vmem_limit = int(min(_VMEM_CAP, max(20 * _MIB, 6 * block_f32_bytes + 2 * _MIB)))

    if training:
        # Split the serial stats reduction across 2 "cores": megacore-parallel
        # on v7x, a plain serial outer loop on v5e/v6e.
        num_splits = 2 if num_tiles >= 2 else 1
        tiles_per_core = _cdiv(num_tiles, num_splits)
        needs_mask = (Rp % tile_rows != 0) or (num_splits * tiles_per_core != num_tiles)

        def x_index_map(c, i):
            # Clamp so overflow steps stay in bounds; the kernel masks their
            # contribution to zero.
            return (jnp.minimum(c * tiles_per_core + i, num_tiles - 1), 0)

        sum_p, sumsq_p = pl.pallas_call(
            _make_stats_kernel(Rp, tile_rows, Fp, tiles_per_core, needs_mask),
            out_shape=(
                jax.ShapeDtypeStruct((num_splits * 8, Fp), jnp.float32),
                jax.ShapeDtypeStruct((num_splits * 8, Fp), jnp.float32),
            ),
            grid_spec=pltpu.PrefetchScalarGridSpec(
                num_scalar_prefetch=0,
                grid=(num_splits, tiles_per_core),
                in_specs=[pl.BlockSpec((tile_rows, Fp), x_index_map)],
                out_specs=[
                    pl.BlockSpec((8, Fp), lambda c, i: (c, 0)),
                    pl.BlockSpec((8, Fp), lambda c, i: (c, 0)),
                ],
            ),
            compiler_params=pltpu.CompilerParams(
                dimension_semantics=("parallel", "arbitrary"),
                vmem_limit_bytes=vmem_limit),
        )(xp)

        total_sum = jnp.sum(sum_p, axis=0)
        total_sumsq = jnp.sum(sumsq_p, axis=0)
        if k > 1:
            total_sum = total_sum.reshape(k, F).sum(axis=0)
            total_sumsq = total_sumsq.reshape(k, F).sum(axis=0)
        mean = total_sum / R
        # One-pass variance with clamp (the fused path above uses the centered,
        # more accurate form whenever the slab fits VMEM).
        var = jnp.maximum(total_sumsq / R - mean * mean, 0.0)
        new_rm = (1.0 - MOMENTUM) * running_mean + MOMENTUM * mean
        new_rv = (1.0 - MOMENTUM) * running_var + MOMENTUM * var
    else:
        mean = running_mean.astype(jnp.float32)
        var = running_var.astype(jnp.float32)
        new_rm = running_mean
        new_rv = running_var

    # Single-FMA normalize: y = x * scale + bias, with scale/bias pre-broadcast
    # to a full native (8, Fp) tile in the wrapper.
    scale = gamma_f * lax.rsqrt(var + EPS)
    bias = beta_f - mean * scale
    scale_p = jnp.tile(scale, (8, k))   # (8, Fp)
    bias_p = jnp.tile(bias, (8, k))     # (8, Fp)

    out_p = pl.pallas_call(
        _norm_kernel,
        out_shape=jax.ShapeDtypeStruct((Rp, Fp), x.dtype),
        grid_spec=pltpu.PrefetchScalarGridSpec(
            num_scalar_prefetch=0,
            grid=(num_tiles,),
            in_specs=[
                pl.BlockSpec((tile_rows, Fp), lambda i: (i, 0)),
                pl.BlockSpec((8, Fp), lambda i: (0, 0)),
                pl.BlockSpec((8, Fp), lambda i: (0, 0)),
            ],
            out_specs=pl.BlockSpec((tile_rows, Fp), lambda i: (i, 0)),
        ),
        compiler_params=pltpu.CompilerParams(
            dimension_semantics=("parallel",),
            vmem_limit_bytes=vmem_limit),
    )(xp, scale_p, bias_p)

    return out_p.reshape(B, N1, N2, F), new_rm, new_rv


if __name__ == "__main__":
    key = jax.random.PRNGKey(0)
    k1, k2, k3, k4 = jax.random.split(key, 4)

    def reference(x, gamma, beta, rm, rv, training):
        F = x.shape[-1]
        xf = x.reshape(-1, F)
        if training:
            mean = xf.mean(axis=0)
            var = xf.var(axis=0)  # ddof=0 -> unbiased=False
            new_rm = (1 - MOMENTUM) * rm + MOMENTUM * mean
            new_rv = (1 - MOMENTUM) * rv + MOMENTUM * var
        else:
            mean, var = rm, rv
            new_rm, new_rv = rm, rv
        y = (xf - mean) / jnp.sqrt(var + EPS) * gamma + beta
        return y.reshape(x.shape), new_rm, new_rv

    # ---- test 1: fused training path (batch=2, num_nodes=16, embed_dim=32),
    #              then eval mode (streaming normalize) ----
    B, N, F = 2, 16, 32
    x = jax.random.normal(k1, (B, N, N, F), dtype=jnp.float32)
    gamma = 1.0 + 0.1 * jax.random.normal(k2, (F,), dtype=jnp.float32)
    beta = 0.1 * jax.random.normal(k3, (F,), dtype=jnp.float32)
    rm = jnp.zeros((F,), jnp.float32)
    rv = jnp.ones((F,), jnp.float32)

    out, nrm, nrv = custom_batch_norm(x, gamma, beta, rm, rv, training=True)
    out = jax.block_until_ready(out)
    ref_out, ref_rm, ref_rv = reference(x, gamma, beta, rm, rv, True)
    np.testing.assert_allclose(np.asarray(out), np.asarray(ref_out), atol=2e-5, rtol=1e-5)
    np.testing.assert_allclose(np.asarray(nrm), np.asarray(ref_rm), atol=1e-6, rtol=1e-5)
    np.testing.assert_allclose(np.asarray(nrv), np.asarray(ref_rv), atol=1e-6, rtol=1e-5)

    out_e, _, _ = custom_batch_norm(x, gamma, beta, nrm, nrv, training=False)
    out_e = jax.block_until_ready(out_e)
    ref_e, _, _ = reference(x, gamma, beta, nrm, nrv, False)
    np.testing.assert_allclose(np.asarray(out_e), np.asarray(ref_e), atol=2e-5, rtol=1e-5)

    # ---- test 2: streaming path, non-divisible rows (tail mask) + odd tile
    #              count across the 2-way core split (clamped overflow step) ----
    x2 = jax.random.normal(k4, (3, 10, 10, F), dtype=jnp.float32)  # R=300 -> Rp=75
    out2, nrm2, nrv2 = custom_batch_norm(
        x2, gamma, beta, rm, rv, training=True,
        target_block_bytes=8192, fuse_max_bytes=0)
    out2 = jax.block_until_ready(out2)
    ref2, ref_rm2, ref_rv2 = reference(x2, gamma, beta, rm, rv, True)
    np.testing.assert_allclose(np.asarray(out2), np.asarray(ref2), atol=2e-5, rtol=1e-5)
    np.testing.assert_allclose(np.asarray(nrm2), np.asarray(ref_rm2), atol=1e-6, rtol=1e-5)
    np.testing.assert_allclose(np.asarray(nrv2), np.asarray(ref_rv2), atol=1e-6, rtol=1e-5)

    # ---- test 3: streaming path, divisible rows (unmasked fast path), even split ----
    out3, nrm3, nrv3 = custom_batch_norm(
        x, gamma, beta, rm, rv, training=True,
        target_block_bytes=16384, fuse_max_bytes=0)
    out3 = jax.block_until_ready(out3)
    np.testing.assert_allclose(np.asarray(out3), np.asarray(ref_out), atol=2e-5, rtol=1e-5)
    np.testing.assert_allclose(np.asarray(nrm3), np.asarray(ref_rm), atol=1e-6, rtol=1e-5)
    np.testing.assert_allclose(np.asarray(nrv3), np.asarray(ref_rv), atol=1e-6, rtol=1e-5)

    print("KERNEL_OK")
</pallas_src>

<mosaic_0001>
module attributes {stable_mosaic.version = 11 : i64} {
  func.func @fused_kernel(%arg0: memref<512x32xf32, #tpu.memory_space<vmem>>, %arg1: memref<1x32xf32, #tpu.memory_space<vmem>>, %arg2: memref<1x32xf32, #tpu.memory_space<vmem>>, %arg3: memref<512x32xf32, #tpu.memory_space<vmem>>, %arg4: memref<1x32xf32, #tpu.memory_space<vmem>>, %arg5: memref<1x32xf32, #tpu.memory_space<vmem>>) attributes {dimension_semantics = [], scalar_prefetch = 0 : i64, scratch_operands = 0 : i64, tpu.core_type = #tpu.core_type<tc>} {
    %c0 = arith.constant 0 : index
    %c0_0 = arith.constant 0 : index
    %0 = vector.load %arg0[%c0, %c0_0] : memref<512x32xf32, #tpu.memory_space<vmem>>, vector<512x32xf32>
    %cst = arith.constant dense<0.000000e+00> : vector<32xf32>
    %1 = vector.multi_reduction <add>, %0, %cst [0] : vector<512x32xf32> to vector<32xf32>
    %2 = vector.shape_cast %1 : vector<32xf32> to vector<1x32xf32>
    %cst_1 = arith.constant 0.001953125 : f32
    %3 = vector.broadcast %cst_1 : f32 to vector<1x32xf32>
    %4 = arith.mulf %2, %3 : vector<1x32xf32>
    %5 = vector.broadcast %4 : vector<1x32xf32> to vector<512x32xf32>
    %6 = arith.subf %0, %5 : vector<512x32xf32>
    %7 = arith.mulf %6, %6 : vector<512x32xf32>
    %cst_2 = arith.constant dense<0.000000e+00> : vector<32xf32>
    %8 = vector.multi_reduction <add>, %7, %cst_2 [0] : vector<512x32xf32> to vector<32xf32>
    %9 = vector.shape_cast %8 : vector<32xf32> to vector<1x32xf32>
    %cst_3 = arith.constant 0.001953125 : f32
    %10 = vector.broadcast %cst_3 : f32 to vector<1x32xf32>
    %11 = arith.mulf %9, %10 : vector<1x32xf32>
    %cst_4 = arith.constant 0.000000e+00 : f32
    %12 = vector.broadcast %cst_4 : f32 to vector<1x32xf32>
    %13 = arith.maximumf %11, %12 : vector<1x32xf32>
    %c0_5 = arith.constant 0 : index
    %c0_6 = arith.constant 0 : index
    %14 = vector.load %arg1[%c0_5, %c0_6] : memref<1x32xf32, #tpu.memory_space<vmem>>, vector<1x32xf32>
    %cst_7 = arith.constant 9.99999974E-6 : f32
    %15 = vector.broadcast %cst_7 : f32 to vector<1x32xf32>
    %16 = arith.addf %13, %15 : vector<1x32xf32>
    %17 = math.rsqrt %16 : vector<1x32xf32>
    %18 = arith.mulf %14, %17 : vector<1x32xf32>
    %19 = vector.broadcast %18 : vector<1x32xf32> to vector<512x32xf32>
    %20 = arith.mulf %6, %19 : vector<512x32xf32>
    %c0_8 = arith.constant 0 : index
    %c0_9 = arith.constant 0 : index
    %21 = vector.load %arg2[%c0_8, %c0_9] : memref<1x32xf32, #tpu.memory_space<vmem>>, vector<1x32xf32>
    %22 = vector.broadcast %21 : vector<1x32xf32> to vector<512x32xf32>
    %23 = arith.addf %20, %22 : vector<512x32xf32>
    %c0_10 = arith.constant 0 : index
    %c0_11 = arith.constant 0 : index
    %24 = vector.load %arg3[%c0_10, %c0_11] : memref<512x32xf32, #tpu.memory_space<vmem>>, vector<512x32xf32>
    tpu.vector_store %arg3[%c0_10, %c0_11], %23 {strides = array<i32>} : memref<512x32xf32, #tpu.memory_space<vmem>>, vector<512x32xf32>,
    %c0_12 = arith.constant 0 : index
    %c0_13 = arith.constant 0 : index
    %25 = vector.load %arg4[%c0_12, %c0_13] : memref<1x32xf32, #tpu.memory_space<vmem>>, vector<1x32xf32>
    tpu.vector_store %arg4[%c0_12, %c0_13], %4 {strides = array<i32>} : memref<1x32xf32, #tpu.memory_space<vmem>>, vector<1x32xf32>,
    %c0_14 = arith.constant 0 : index
    %c0_15 = arith.constant 0 : index
    %26 = vector.load %arg5[%c0_14, %c0_15] : memref<1x32xf32, #tpu.memory_space<vmem>>, vector<1x32xf32>
    tpu.vector_store %arg5[%c0_14, %c0_15], %13 {strides = array<i32>} : memref<1x32xf32, #tpu.memory_space<vmem>>, vector<1x32xf32>,
    return
  }
}

</mosaic_0001>

<llo_original>
// kernel: custom_batch_norm.1
$region0: #{custom_batch_norm.1}
  #allocation0 [shape = 'u32[]', space=smem, size = 0x4, offset = 0x4, fixed_abs, tag = 'smem constant byte address 0x4 - core index']
  #allocation1 [shape = 'u32[144,128]{1,0:T(1,128)}', space=vmem, size = 0x12000, scoped, tag = 'internal scratch']
  %s0 = inlined_call_operand.hbm [shape: f32[512,32], index: 0, kind: input, shape index: {}]
  %s1 = inlined_call_operand.vmem [shape: f32[1,32], index: 1, kind: input, shape index: {}]
  %s2 = inlined_call_operand.vmem [shape: f32[1,32], index: 2, kind: input, shape index: {}]
  %s3 = inlined_call_operand.hbm [shape: f32[512,32], index: 3, kind: output, shape index: {0}]
  %s4 = inlined_call_operand.vmem [shape: f32[1,32], index: 4, kind: output, shape index: {1}]
  %s5 = inlined_call_operand.vmem [shape: f32[1,32], index: 5, kind: output, shape index: {2}]
  %6 = xla_tuple %s3, %s4, %s5
  %s7 = sld [smem:[#allocation0]]
  $region42: #{custom_batch_norm.1} parent=0
    _
  %s9 = ssub.s32 1, %s7
  %s10 = scalar_select 0, %s9, %s7
  $region1: #{custom_batch_norm.1} parent=0
    #allocation2 [shape = 'u8[262144]{0}', space=vmem, size = 0x40000, scoped, tag = 'input window, operand 0, single buffered']
    #allocation3 [shape = 's32[1]{0}', space=sflag, size = 0x4, scoped, tag = 'scoped memory for custom_batch_norm.1']
    #allocation4 [shape = 's32[1]{0}', space=sflag, size = 0x4, scoped, tag = 'scoped memory for custom_batch_norm.1']
    #allocation5 [shape = 'u8[262144]{0}', space=vmem, size = 0x40000, scoped, tag = 'output window, operand 0, single buffered']
    %11 = vsyncpa [#allocation3], 0
    %12 = vsyncpa [#allocation4], 0
    // Predicated region
    $region2: #{custom_batch_norm.1} parent=1 // pred_check
      _
    $region3: #{custom_batch_norm.1} parent=1 // pred_check_branch
      %14 = sbr.rel (0) target = $region5
    $region4: #{custom_batch_norm.1} parent=1 // pred_region
      %s16 = ssub.s32 8192, 8192
      %17 = vsyncadd [#allocation3], %s16
      %s18 = sshll.u32 [#allocation2], 4
      %s19 = int_to_ptr.vmem [resolvable:$true] %s18
      %24 = dma.hbm_to_vmem [thread:$0]  %s0, 8192, %s19, [#allocation3], 128, 128, 8
    $region5: #{custom_batch_norm.1} parent=1 // pred_fallthru
      _
    // Predicated region
    $region6: #{custom_batch_norm.1} parent=1 // pred_check
      _
    $region7: #{custom_batch_norm.1} parent=1 // pred_check_branch
      %26 = sbr.rel (0) target = $region9
    $region8: #{custom_batch_norm.1} parent=1 // pred_region
      _
    $region9: #{custom_batch_norm.1} parent=1 // pred_fallthru
      _
    // Predicated region
    $region10: #{custom_batch_norm.1} parent=1 // pred_check
      _
    $region11: #{custom_batch_norm.1} parent=1 // pred_check_branch
      %28 = sbr.rel (0) target = $region13
    $region12: #{custom_batch_norm.1} parent=1 // pred_region
      _
    $region13: #{custom_batch_norm.1} parent=1 // pred_fallthru
      _
    // Predicated region
    $region14: #{custom_batch_norm.1} parent=1 // pred_check
      _
    $region15: #{custom_batch_norm.1} parent=1 // pred_check_branch
      %30 = sbr.rel (0) target = $region17
    $region16: #{custom_batch_norm.1} parent=1 // pred_region
      %31 = dma.done [#allocation3], 8192
    $region17: #{custom_batch_norm.1} parent=1 // pred_fallthru
      _
    %v32 = vld [vmem:[#allocation2] sm:$0xff]
    %v33 = vld [vmem:[#allocation2 + $0x8] sm:$0xff]
    %v34 = vld [vmem:[#allocation2 + $0x10] sm:$0xff]
    %v35 = vld [vmem:[#allocation2 + $0x18] sm:$0xff]
    %v36 = vld [vmem:[#allocation2 + $0x20] sm:$0xff]
    %v37 = vld [vmem:[#allocation2 + $0x28] sm:$0xff]
    %v38 = vld [vmem:[#allocation2 + $0x30] sm:$0xff]
    %v39 = vld [vmem:[#allocation2 + $0x38] sm:$0xff]
    %v40 = vld [vmem:[#allocation2 + $0x40] sm:$0xff]
    %v41 = vld [vmem:[#allocation2 + $0x48] sm:$0xff]
    %v42 = vld [vmem:[#allocation2 + $0x50] sm:$0xff]
    %v43 = vld [vmem:[#allocation2 + $0x58] sm:$0xff]
    %v44 = vld [vmem:[#allocation2 + $0x60] sm:$0xff]
    %v45 = vld [vmem:[#allocation2 + $0x68] sm:$0xff]
    %v46 = vld [vmem:[#allocation2 + $0x70] sm:$0xff]
    %v47 = vld [vmem:[#allocation2 + $0x78] sm:$0xff]
    %v48 = vld [vmem:[#allocation2 + $0x80] sm:$0xff]
    %v49 = vld [vmem:[#allocation2 + $0x88] sm:$0xff]
    %v50 = vld [vmem:[#allocation2 + $0x90] sm:$0xff]
    %v51 = vld [vmem:[#allocation2 + $0x98] sm:$0xff]
    %v52 = vld [vmem:[#allocation2 + $0xa0] sm:$0xff]
    %v53 = vld [vmem:[#allocation2 + $0xa8] sm:$0xff]
    %v54 = vld [vmem:[#allocation2 + $0xb0] sm:$0xff]
    %v55 = vld [vmem:[#allocation2 + $0xb8] sm:$0xff]
    %v56 = vld [vmem:[#allocation2 + $0xc0] sm:$0xff]
    %v57 = vld [vmem:[#allocation2 + $0xc8] sm:$0xff]
    %v58 = vld [vmem:[#allocation2 + $0xd0] sm:$0xff]
    %v59 = vld [vmem:[#allocation2 + $0xd8] sm:$0xff]
    %v60 = vld [vmem:[#allocation2 + $0xe0] sm:$0xff]
    %v61 = vld [vmem:[#allocation2 + $0xe8] sm:$0xff]
    %v62 = vld [vmem:[#allocation2 + $0xf0] sm:$0xff]
    %v63 = vld [vmem:[#allocation2 + $0xf8] sm:$0xff]
    %v64 = vld [vmem:[#allocation2 + $0x100] sm:$0xff]
    %v65 = vld [vmem:[#allocation2 + $0x108] sm:$0xff]
    %v66 = vld [vmem:[#allocation2 + $0x110] sm:$0xff]
    %v67 = vld [vmem:[#allocation2 + $0x118] sm:$0xff]
    %v68 = vld [vmem:[#allocation2 + $0x120] sm:$0xff]
    %v69 = vld [vmem:[#allocation2 + $0x128] sm:$0xff]
    %v70 = vld [vmem:[#allocation2 + $0x130] sm:$0xff]
    %v71 = vld [vmem:[#allocation2 + $0x138] sm:$0xff]
    %v72 = vld [vmem:[#allocation2 + $0x140] sm:$0xff]
    %v73 = vld [vmem:[#allocation2 + $0x148] sm:$0xff]
    %v74 = vld [vmem:[#allocation2 + $0x150] sm:$0xff]
    %v75 = vld [vmem:[#allocation2 + $0x158] sm:$0xff]
    %v76 = vld [vmem:[#allocation2 + $0x160] sm:$0xff]
    %v77 = vld [vmem:[#allocation2 + $0x168] sm:$0xff]
    %v78 = vld [vmem:[#allocation2 + $0x170] sm:$0xff]
    %v79 = vld [vmem:[#allocation2 + $0x178] sm:$0xff]
    %v80 = vld [vmem:[#allocation2 + $0x180] sm:$0xff]
    %v81 = vld [vmem:[#allocation2 + $0x188] sm:$0xff]
    %v82 = vld [vmem:[#allocation2 + $0x190] sm:$0xff]
    %v83 = vld [vmem:[#allocation2 + $0x198] sm:$0xff]
    %v84 = vld [vmem:[#allocation2 + $0x1a0] sm:$0xff]
    %v85 = vld [vmem:[#allocation2 + $0x1a8] sm:$0xff]
    %v86 = vld [vmem:[#allocation2 + $0x1b0] sm:$0xff]
    %v87 = vld [vmem:[#allocation2 + $0x1b8] sm:$0xff]
    %v88 = vld [vmem:[#allocation2 + $0x1c0] sm:$0xff]
    %v89 = vld [vmem:[#allocation2 + $0x1c8] sm:$0xff]
    %v90 = vld [vmem:[#allocation2 + $0x1d0] sm:$0xff]
    %v91 = vld [vmem:[#allocation2 + $0x1d8] sm:$0xff]
    %v92 = vld [vmem:[#allocation2 + $0x1e0] sm:$0xff]
    %v93 = vld [vmem:[#allocation2 + $0x1e8] sm:$0xff]
    %v94 = vld [vmem:[#allocation2 + $0x1f0] sm:$0xff]
    %v95 = vld [vmem:[#allocation2 + $0x1f8] sm:$0xff]
    %vm96 = vcmask 261120
    %v97 = vsel %vm96, %v32, 0.0
    %v98 = vsel %vm96, %v33, 0.0
    %v99 = vadd.f32 %v97, %v98
    %v100 = vsel %vm96, %v34, 0.0
    %v101 = vadd.f32 %v99, %v100
    %v102 = vsel %vm96, %v35, 0.0
    %v103 = vadd.f32 %v101, %v102
    %v104 = vsel %vm96, %v36, 0.0
    %v105 = vadd.f32 %v103, %v104
    %v106 = vsel %vm96, %v37, 0.0
    %v107 = vadd.f32 %v105, %v106
    %v108 = vsel %vm96, %v38, 0.0
    %v109 = vadd.f32 %v107, %v108
    %v110 = vsel %vm96, %v39, 0.0
    %v111 = vadd.f32 %v109, %v110
    %v112 = vsel %vm96, %v40, 0.0
    %v113 = vadd.f32 %v111, %v112
    %v114 = vsel %vm96, %v41, 0.0
    %v115 = vadd.f32 %v113, %v114
    %v116 = vsel %vm96, %v42, 0.0
    %v117 = vadd.f32 %v115, %v116
    %v118 = vsel %vm96, %v43, 0.0
    %v119 = vadd.f32 %v117, %v118
    %v120 = vsel %vm96, %v44, 0.0
    %v121 = vadd.f32 %v119, %v120
    %v122 = vsel %vm96, %v45, 0.0
    %v123 = vadd.f32 %v121, %v122
    %v124 = vsel %vm96, %v46, 0.0
    %v125 = vadd.f32 %v123, %v124
    %v126 = vsel %vm96, %v47, 0.0
    %v127 = vadd.f32 %v125, %v126
    %v128 = vsel %vm96, %v48, 0.0
    %v129 = vadd.f32 %v127, %v128
    %v130 = vsel %vm96, %v49, 0.0
    %v131 = vadd.f32 %v129, %v130
    %v132 = vsel %vm96, %v50, 0.0
    %v133 = vadd.f32 %v131, %v132
    %v134 = vsel %vm96, %v51, 0.0
    %v135 = vadd.f32 %v133, %v134
    %v136 = vsel %vm96, %v52, 0.0
    %v137 = vadd.f32 %v135, %v136
    %v138 = vsel %vm96, %v53, 0.0
    %v139 = vadd.f32 %v137, %v138
    %v140 = vsel %vm96, %v54, 0.0
    %v141 = vadd.f32 %v139, %v140
    %v142 = vsel %vm96, %v55, 0.0
    %v143 = vadd.f32 %v141, %v142
    %v144 = vsel %vm96, %v56, 0.0
    %v145 = vadd.f32 %v143, %v144
    %v146 = vsel %vm96, %v57, 0.0
    %v147 = vadd.f32 %v145, %v146
    %v148 = vsel %vm96, %v58, 0.0
    %v149 = vadd.f32 %v147, %v148
    %v150 = vsel %vm96, %v59, 0.0
    %v151 = vadd.f32 %v149, %v150
    %v152 = vsel %vm96, %v60, 0.0
    %v153 = vadd.f32 %v151, %v152
    %v154 = vsel %vm96, %v61, 0.0
    %v155 = vadd.f32 %v153, %v154
    %v156 = vsel %vm96, %v62, 0.0
    %v157 = vadd.f32 %v155, %v156
    %v158 = vsel %vm96, %v63, 0.0
    %v159 = vadd.f32 %v157, %v158
    %v160 = vsel %vm96, %v64, 0.0
    %v161 = vadd.f32 %v159, %v160
    %v162 = vsel %vm96, %v65, 0.0
    %v163 = vadd.f32 %v161, %v162
    %v164 = vsel %vm96, %v66, 0.0
    %v165 = vadd.f32 %v163, %v164
    %v166 = vsel %vm96, %v67, 0.0
    %v167 = vadd.f32 %v165, %v166
    %v168 = vsel %vm96, %v68, 0.0
    %v169 = vadd.f32 %v167, %v168
    %v170 = vsel %vm96, %v69, 0.0
    %v171 = vadd.f32 %v169, %v170
    %v172 = vsel %vm96, %v70, 0.0
    %v173 = vadd.f32 %v171, %v172
    %v174 = vsel %vm96, %v71, 0.0
    %v175 = vadd.f32 %v173, %v174
    %v176 = vsel %vm96, %v72, 0.0
    %v177 = vadd.f32 %v175, %v176
    %v178 = vsel %vm96, %v73, 0.0
    %v179 = vadd.f32 %v177, %v178
    %v180 = vsel %vm96, %v74, 0.0
    %v181 = vadd.f32 %v179, %v180
    %v182 = vsel %vm96, %v75, 0.0
    %v183 = vadd.f32 %v181, %v182
    %v184 = vsel %vm96, %v76, 0.0
    %v185 = vadd.f32 %v183, %v184
    %v186 = vsel %vm96, %v77, 0.0
    %v187 = vadd.f32 %v185, %v186
    %v188 = vsel %vm96, %v78, 0.0
    %v189 = vadd.f32 %v187, %v188
    %v190 = vsel %vm96, %v79, 0.0
    %v191 = vadd.f32 %v189, %v190
    %v192 = vsel %vm96, %v80, 0.0
    %v193 = vadd.f32 %v191, %v192
    %v194 = vsel %vm96, %v81, 0.0
    %v195 = vadd.f32 %v193, %v194
    %v196 = vsel %vm96, %v82, 0.0
    %v197 = vadd.f32 %v195, %v196
    %v198 = vsel %vm96, %v83, 0.0
    %v199 = vadd.f32 %v197, %v198
    %v200 = vsel %vm96, %v84, 0.0
    %v201 = vadd.f32 %v199, %v200
    %v202 = vsel %vm96, %v85, 0.0
    %v203 = vadd.f32 %v201, %v202
    %v204 = vsel %vm96, %v86, 0.0
    %v205 = vadd.f32 %v203, %v204
    %v206 = vsel %vm96, %v87, 0.0
    %v207 = vadd.f32 %v205, %v206
    %v208 = vsel %vm96, %v88, 0.0
    %v209 = vadd.f32 %v207, %v208
    %v210 = vsel %vm96, %v89, 0.0
    %v211 = vadd.f32 %v209, %v210
    %v212 = vsel %vm96, %v90, 0.0
    %v213 = vadd.f32 %v211, %v212
    %v214 = vsel %vm96, %v91, 0.0
    %v215 = vadd.f32 %v213, %v214
    %v216 = vsel %vm96, %v92, 0.0
    %v217 = vadd.f32 %v215, %v216
    %v218 = vsel %vm96, %v93, 0.0
    %v219 = vadd.f32 %v217, %v218
    %v220 = vsel %vm96, %v94, 0.0
    %v221 = vadd.f32 %v219, %v220
    %v222 = vsel %vm96, %v95, 0.0
    %v223 = vadd.f32 %v221, %v222
    %v224 = vrot.slane %v223, 4
    %v225 = vadd.f32 %v223, %v224
    %v226 = vrot.slane %v225, 2
    %v227 = vadd.f32 %v225, %v226
    %v228 = vrot.slane %v227, 1
    %v229 = vadd.f32 %v227, %v228
    %v230 = vmul.f32 %v229, 0.001953125
    %v231 = vsub.f32 %v32, %v230
    %v232 = vsub.f32 %v33, %v230
    %v233 = vsub.f32 %v34, %v230
    %v234 = vsub.f32 %v35, %v230
    %v235 = vsub.f32 %v36, %v230
    %v236 = vsub.f32 %v37, %v230
    %v237 = vsub.f32 %v38, %v230
    %v238 = vsub.f32 %v39, %v230
    %v239 = vsub.f32 %v40, %v230
    %v240 = vsub.f32 %v41, %v230
    %v241 = vsub.f32 %v42, %v230
    %v242 = vsub.f32 %v43, %v230
    %v243 = vsub.f32 %v44, %v230
    %v244 = vsub.f32 %v45, %v230
    %v245 = vsub.f32 %v46, %v230
    %v246 = vsub.f32 %v47, %v230
    %v247 = vsub.f32 %v48, %v230
    %v248 = vsub.f32 %v49, %v230
    %v249 = vsub.f32 %v50, %v230
    %v250 = vsub.f32 %v51, %v230
    %v251 = vsub.f32 %v52, %v230
    %v252 = vsub.f32 %v53, %v230
    %v253 = vsub.f32 %v54, %v230
    %v254 = vsub.f32 %v55, %v230
    %v255 = vsub.f32 %v56, %v230
    %v256 = vsub.f32 %v57, %v230
    %v257 = vsub.f32 %v58, %v230
    %v258 = vsub.f32 %v59, %v230
    %v259 = vsub.f32 %v60, %v230
    %v260 = vsub.f32 %v61, %v230
    %v261 = vsub.f32 %v62, %v230
    %v262 = vsub.f32 %v63, %v230
    %v263 = vsub.f32 %v64, %v230
    %v264 = vsub.f32 %v65, %v230
    %v265 = vsub.f32 %v66, %v230
    %v266 = vsub.f32 %v67, %v230
    %v267 = vsub.f32 %v68, %v230
    %v268 = vsub.f32 %v69, %v230
    %v269 = vsub.f32 %v70, %v230
    %v270 = vsub.f32 %v71, %v230
    %v271 = vsub.f32 %v72, %v230
    %v272 = vsub.f32 %v73, %v230
    %v273 = vsub.f32 %v74, %v230
    %v274 = vsub.f32 %v75, %v230
    %v275 = vsub.f32 %v76, %v230
    %v276 = vsub.f32 %v77, %v230
    %v277 = vsub.f32 %v78, %v230
    %v278 = vsub.f32 %v79, %v230
    %v279 = vsub.f32 %v80, %v230
    %v280 = vsub.f32 %v81, %v230
    %v281 = vsub.f32 %v82, %v230
    %v282 = vsub.f32 %v83, %v230
    %v283 = vsub.f32 %v84, %v230
    %v284 = vsub.f32 %v85, %v230
    %v285 = vsub.f32 %v86, %v230
    %v286 = vsub.f32 %v87, %v230
    %v287 = vsub.f32 %v88, %v230
    %v288 = vsub.f32 %v89, %v230
    %v289 = vsub.f32 %v90, %v230
    %v290 = vsub.f32 %v91, %v230
    %v291 = vsub.f32 %v92, %v230
    %v292 = vsub.f32 %v93, %v230
    %v293 = vsub.f32 %v94, %v230
    %v294 = vsub.f32 %v95, %v230
    %v295 = vmul.f32 %v231, %v231
    %v296 = vmul.f32 %v232, %v232
    %v297 = vmul.f32 %v233, %v233
    %v298 = vmul.f32 %v234, %v234
    %v299 = vmul.f32 %v235, %v235
    %v300 = vmul.f32 %v236, %v236
    %v301 = vmul.f32 %v237, %v237
    %v302 = vmul.f32 %v238, %v238
    %v303 = vmul.f32 %v239, %v239
    %v304 = vmul.f32 %v240, %v240
    %v305 = vmul.f32 %v241, %v241
    %v306 = vmul.f32 %v242, %v242
    %v307 = vmul.f32 %v243, %v243
    %v308 = vmul.f32 %v244, %v244
    %v309 = vmul.f32 %v245, %v245
    %v310 = vmul.f32 %v246, %v246
    %v311 = vmul.f32 %v247, %v247
    %v312 = vmul.f32 %v248, %v248
    %v313 = vmul.f32 %v249, %v249
    %v314 = vmul.f32 %v250, %v250
    %v315 = vmul.f32 %v251, %v251
    %v316 = vmul.f32 %v252, %v252
    %v317 = vmul.f32 %v253, %v253
    %v318 = vmul.f32 %v254, %v254
    %v319 = vmul.f32 %v255, %v255
    %v320 = vmul.f32 %v256, %v256
    %v321 = vmul.f32 %v257, %v257
    %v322 = vmul.f32 %v258, %v258
    %v323 = vmul.f32 %v259, %v259
    %v324 = vmul.f32 %v260, %v260
    %v325 = vmul.f32 %v261, %v261
    %v326 = vmul.f32 %v262, %v262
    %v327 = vmul.f32 %v263, %v263
    %v328 = vmul.f32 %v264, %v264
    %v329 = vmul.f32 %v265, %v265
    %v330 = vmul.f32 %v266, %v266
    %v331 = vmul.f32 %v267, %v267
    %v332 = vmul.f32 %v268, %v268
    %v333 = vmul.f32 %v269, %v269
    %v334 = vmul.f32 %v270, %v270
    %v335 = vmul.f32 %v271, %v271
    %v336 = vmul.f32 %v272, %v272
    %v337 = vmul.f32 %v273, %v273
    %v338 = vmul.f32 %v274, %v274
    %v339 = vmul.f32 %v275, %v275
    %v340 = vmul.f32 %v276, %v276
    %v341 = vmul.f32 %v277, %v277
    %v342 = vmul.f32 %v278, %v278
    %v343 = vmul.f32 %v279, %v279
    %v344 = vmul.f32 %v280, %v280
    %v345 = vmul.f32 %v281, %v281
    %v346 = vmul.f32 %v282, %v282
    %v347 = vmul.f32 %v283, %v283
    %v348 = vmul.f32 %v284, %v284
    %v349 = vmul.f32 %v285, %v285
    %v350 = vmul.f32 %v286, %v286
    %v351 = vmul.f32 %v287, %v287
    %v352 = vmul.f32 %v288, %v288
    %v353 = vmul.f32 %v289, %v289
    %v354 = vmul.f32 %v290, %v290
    %v355 = vmul.f32 %v291, %v291
    %v356 = vmul.f32 %v292, %v292
    %v357 = vmul.f32 %v293, %v293
    %v358 = vmul.f32 %v294, %v294
    %v359 = vsel %vm96, %v295, 0.0
    %v360 = vsel %vm96, %v296, 0.0
    %v361 = vadd.f32 %v359, %v360
    %v362 = vsel %vm96, %v297, 0.0
    %v363 = vadd.f32 %v361, %v362
    %v364 = vsel %vm96, %v298, 0.0
    %v365 = vadd.f32 %v363, %v364
    %v366 = vsel %vm96, %v299, 0.0
    %v367 = vadd.f32 %v365, %v366
    %v368 = vsel %vm96, %v300, 0.0
    %v369 = vadd.f32 %v367, %v368
    %v370 = vsel %vm96, %v301, 0.0
    %v371 = vadd.f32 %v369, %v370
    %v372 = vsel %vm96, %v302, 0.0
    %v373 = vadd.f32 %v371, %v372
    %v374 = vsel %vm96, %v303, 0.0
    %v375 = vadd.f32 %v373, %v374
    %v376 = vsel %vm96, %v304, 0.0
    %v377 = vadd.f32 %v375, %v376
    %v378 = vsel %vm96, %v305, 0.0
    %v379 = vadd.f32 %v377, %v378
    %v380 = vsel %vm96, %v306, 0.0
    %v381 = vadd.f32 %v379, %v380
    %v382 = vsel %vm96, %v307, 0.0
    %v383 = vadd.f32 %v381, %v382
    %v384 = vsel %vm96, %v308, 0.0
    %v385 = vadd.f32 %v383, %v384
    %v386 = vsel %vm96, %v309, 0.0
    %v387 = vadd.f32 %v385, %v386
    %v388 = vsel %vm96, %v310, 0.0
    %v389 = vadd.f32 %v387, %v388
    %v390 = vsel %vm96, %v311, 0.0
    %v391 = vadd.f32 %v389, %v390
    %v392 = vsel %vm96, %v312, 0.0
    %v393 = vadd.f32 %v391, %v392
    %v394 = vsel %vm96, %v313, 0.0
    %v395 = vadd.f32 %v393, %v394
    %v396 = vsel %vm96, %v314, 0.0
    %v397 = vadd.f32 %v395, %v396
    %v398 = vsel %vm96, %v315, 0.0
    %v399 = vadd.f32 %v397, %v398
    %v400 = vsel %vm96, %v316, 0.0
    %v401 = vadd.f32 %v399, %v400
    %v402 = vsel %vm96, %v317, 0.0
    %v403 = vadd.f32 %v401, %v402
    %v404 = vsel %vm96, %v318, 0.0
    %v405 = vadd.f32 %v403, %v404
    %v406 = vsel %vm96, %v319, 0.0
    %v407 = vadd.f32 %v405, %v406
    %v408 = vsel %vm96, %v320, 0.0
    %v409 = vadd.f32 %v407, %v408
    %v410 = vsel %vm96, %v321, 0.0
    %v411 = vadd.f32 %v409, %v410
    %v412 = vsel %vm96, %v322, 0.0
    %v413 = vadd.f32 %v411, %v412
    %v414 = vsel %vm96, %v323, 0.0
    %v415 = vadd.f32 %v413, %v414
    %v416 = vsel %vm96, %v324, 0.0
    %v417 = vadd.f32 %v415, %v416
    %v418 = vsel %vm96, %v325, 0.0
    %v419 = vadd.f32 %v417, %v418
    %v420 = vsel %vm96, %v326, 0.0
    %v421 = vadd.f32 %v419, %v420
    %v422 = vsel %vm96, %v327, 0.0
    %v423 = vadd.f32 %v421, %v422
    %v424 = vsel %vm96, %v328, 0.0
    %v425 = vadd.f32 %v423, %v424
    %v426 = vsel %vm96, %v329, 0.0
    %v427 = vadd.f32 %v425, %v426
    %v428 = vsel %vm96, %v330, 0.0
    %v429 = vadd.f32 %v427, %v428
    %v430 = vsel %vm96, %v331, 0.0
    %v431 = vadd.f32 %v429, %v430
    %v432 = vsel %vm96, %v332, 0.0
    %v433 = vadd.f32 %v431, %v432
    %v434 = vsel %vm96, %v333, 0.0
    %v435 = vadd.f32 %v433, %v434
    %v436 = vsel %vm96, %v334, 0.0
    %v437 = vadd.f32 %v435, %v436
    %v438 = vsel %vm96, %v335, 0.0
    %v439 = vadd.f32 %v437, %v438
    %v440 = vsel %vm96, %v336, 0.0
    %v441 = vadd.f32 %v439, %v440
    %v442 = vsel %vm96, %v337, 0.0
    %v443 = vadd.f32 %v441, %v442
    %v444 = vsel %vm96, %v338, 0.0
    %v445 = vadd.f32 %v443, %v444
    %v446 = vsel %vm96, %v339, 0.0
    %v447 = vadd.f32 %v445, %v446
    %v448 = vsel %vm96, %v340, 0.0
    %v449 = vadd.f32 %v447, %v448
    %v450 = vsel %vm96, %v341, 0.0
    %v451 = vadd.f32 %v449, %v450
    %v452 = vsel %vm96, %v342, 0.0
    %v453 = vadd.f32 %v451, %v452
    %v454 = vsel %vm96, %v343, 0.0
    %v455 = vadd.f32 %v453, %v454
    %v456 = vsel %vm96, %v344, 0.0
    %v457 = vadd.f32 %v455, %v456
    %v458 = vsel %vm96, %v345, 0.0
    %v459 = vadd.f32 %v457, %v458
    %v460 = vsel %vm96, %v346, 0.0
    %v461 = vadd.f32 %v459, %v460
    %v462 = vsel %vm96, %v347, 0.0
    %v463 = vadd.f32 %v461, %v462
    %v464 = vsel %vm96, %v348, 0.0
    %v465 = vadd.f32 %v463, %v464
    %v466 = vsel %vm96, %v349, 0.0
    %v467 = vadd.f32 %v465, %v466
    %v468 = vsel %vm96, %v350, 0.0
    %v469 = vadd.f32 %v467, %v468
    %v470 = vsel %vm96, %v351, 0.0
    %v471 = vadd.f32 %v469, %v470
    %v472 = vsel %vm96, %v352, 0.0
    %v473 = vadd.f32 %v471, %v472
    %v474 = vsel %vm96, %v353, 0.0
    %v475 = vadd.f32 %v473, %v474
    %v476 = vsel %vm96, %v354, 0.0
    %v477 = vadd.f32 %v475, %v476
    %v478 = vsel %vm96, %v355, 0.0
    %v479 = vadd.f32 %v477, %v478
    %v480 = vsel %vm96, %v356, 0.0
    %v481 = vadd.f32 %v479, %v480
    %v482 = vsel %vm96, %v357, 0.0
    %v483 = vadd.f32 %v481, %v482
    %v484 = vsel %vm96, %v358, 0.0
    %v485 = vadd.f32 %v483, %v484
    %v486 = vrot.slane %v485, 4
    %v487 = vadd.f32 %v485, %v486
    %v488 = vrot.slane %v487, 2
    %v489 = vadd.f32 %v487, %v488
    %v490 = vrot.slane %v489, 1
    %v491 = vadd.f32 %v489, %v490
    %v492 = vmul.f32 %v491, 0.001953125
    %v493 = vmax.f32 %v492, 0.0
    %v494 = vld [vmem:[%s1] sm:$0x1]
    %v495 = vadd.f32 %v493, 1e-05
    %v496 = vrsqrt.pop %v495
    %v497 = vmul.f32 %v494, %v496
    %v499 = vlaneseq
    %v500 = vshrl.u32 %v499, 7
    %v501 = vsub.s32 0, %v500
    %v502 = vrot.slane %v497, %v501
    %v504 = vmul.f32 %v231, %v502
    %v505 = vmul.f32 %v232, %v502
    %v506 = vmul.f32 %v233, %v502
    %v507 = vmul.f32 %v234, %v502
    %v508 = vmul.f32 %v235, %v502
    %v509 = vmul.f32 %v236, %v502
    %v510 = vmul.f32 %v237, %v502
    %v511 = vmul.f32 %v238, %v502
    %v512 = vmul.f32 %v239, %v502
    %v513 = vmul.f32 %v240, %v502
    %v514 = vmul.f32 %v241, %v502
    %v515 = vmul.f32 %v242, %v502
    %v516 = vmul.f32 %v243, %v502
    %v517 = vmul.f32 %v244, %v502
    %v518 = vmul.f32 %v245, %v502
    %v519 = vmul.f32 %v246, %v502
    %v520 = vmul.f32 %v247, %v502
    %v521 = vmul.f32 %v248, %v502
    %v522 = vmul.f32 %v249, %v502
    %v523 = vmul.f32 %v250, %v502
    %v524 = vmul.f32 %v251, %v502
    %v525 = vmul.f32 %v252, %v502
    %v526 = vmul.f32 %v253, %v502
    %v527 = vmul.f32 %v254, %v502
    %v528 = vmul.f32 %v255, %v502
    %v529 = vmul.f32 %v256, %v502
    %v530 = vmul.f32 %v257, %v502
    %v531 = vmul.f32 %v258, %v502
    %v532 = vmul.f32 %v259, %v502
    %v533 = vmul.f32 %v260, %v502
    %v534 = vmul.f32 %v261, %v502
    %v535 = vmul.f32 %v262, %v502
    %v536 = vmul.f32 %v263, %v502
    %v537 = vmul.f32 %v264, %v502
    %v538 = vmul.f32 %v265, %v502
    %v539 = vmul.f32 %v266, %v502
    %v540 = vmul.f32 %v267, %v502
    %v541 = vmul.f32 %v268, %v502
    %v542 = vmul.f32 %v269, %v502
    %v543 = vmul.f32 %v270, %v502
    %v544 = vmul.f32 %v271, %v502
    %v545 = vmul.f32 %v272, %v502
    %v546 = vmul.f32 %v273, %v502
    %v547 = vmul.f32 %v274, %v502
    %v548 = vmul.f32 %v275, %v502
    %v549 = vmul.f32 %v276, %v502
    %v550 = vmul.f32 %v277, %v502
    %v551 = vmul.f32 %v278, %v502
    %v552 = vmul.f32 %v279, %v502
    %v553 = vmul.f32 %v280, %v502
    %v554 = vmul.f32 %v281, %v502
    %v555 = vmul.f32 %v282, %v502
    %v556 = vmul.f32 %v283, %v502
    %v557 = vmul.f32 %v284, %v502
    %v558 = vmul.f32 %v285, %v502
    %v559 = vmul.f32 %v286, %v502
    %v560 = vmul.f32 %v287, %v502
    %v561 = vmul.f32 %v288, %v502
    %v562 = vmul.f32 %v289, %v502
    %v563 = vmul.f32 %v290, %v502
    %v564 = vmul.f32 %v291, %v502
    %v565 = vmul.f32 %v292, %v502
    %v566 = vmul.f32 %v293, %v502
    %v567 = vmul.f32 %v294, %v502
    %v568 = vld [vmem:[%s2] sm:$0x1]
    %v570 = vlaneseq
    %v571 = vshrl.u32 %v570, 7
    %v572 = vsub.s32 0, %v571
    %v573 = vrot.slane %v568, %v572
    %v575 = vadd.f32 %v504, %v573
    %v576 = vadd.f32 %v505, %v573
    %v577 = vadd.f32 %v506, %v573
    %v578 = vadd.f32 %v507, %v573
    %v579 = vadd.f32 %v508, %v573
    %v580 = vadd.f32 %v509, %v573
    %v581 = vadd.f32 %v510, %v573
    %v582 = vadd.f32 %v511, %v573
    %v583 = vadd.f32 %v512, %v573
    %v584 = vadd.f32 %v513, %v573
    %v585 = vadd.f32 %v514, %v573
    %v586 = vadd.f32 %v515, %v573
    %v587 = vadd.f32 %v516, %v573
    %v588 = vadd.f32 %v517, %v573
    %v589 = vadd.f32 %v518, %v573
    %v590 = vadd.f32 %v519, %v573
    %v591 = vadd.f32 %v520, %v573
    %v592 = vadd.f32 %v521, %v573
    %v593 = vadd.f32 %v522, %v573
    %v594 = vadd.f32 %v523, %v573
    %v595 = vadd.f32 %v524, %v573
    %v596 = vadd.f32 %v525, %v573
    %v597 = vadd.f32 %v526, %v573
    %v598 = vadd.f32 %v527, %v573
    %v599 = vadd.f32 %v528, %v573
    %v600 = vadd.f32 %v529, %v573
    %v601 = vadd.f32 %v530, %v573
    %v602 = vadd.f32 %v531, %v573
    %v603 = vadd.f32 %v532, %v573
    %v604 = vadd.f32 %v533, %v573
    %v605 = vadd.f32 %v534, %v573
    %v606 = vadd.f32 %v535, %v573
    %v607 = vadd.f32 %v536, %v573
    %v608 = vadd.f32 %v537, %v573
    %v609 = vadd.f32 %v538, %v573
    %v610 = vadd.f32 %v539, %v573
    %v611 = vadd.f32 %v540, %v573
    %v612 = vadd.f32 %v541, %v573
    %v613 = vadd.f32 %v542, %v573
    %v614 = vadd.f32 %v543, %v573
    %v615 = vadd.f32 %v544, %v573
    %v616 = vadd.f32 %v545, %v573
    %v617 = vadd.f32 %v546, %v573
    %v618 = vadd.f32 %v547, %v573
    %v619 = vadd.f32 %v548, %v573
    %v620 = vadd.f32 %v549, %v573
    %v621 = vadd.f32 %v550, %v573
    %v622 = vadd.f32 %v551, %v573
    %v623 = vadd.f32 %v552, %v573
    %v624 = vadd.f32 %v553, %v573
    %v625 = vadd.f32 %v554, %v573
    %v626 = vadd.f32 %v555, %v573
    %v627 = vadd.f32 %v556, %v573
    %v628 = vadd.f32 %v557, %v573
    %v629 = vadd.f32 %v558, %v573
    %v630 = vadd.f32 %v559, %v573
    %v631 = vadd.f32 %v560, %v573
    %v632 = vadd.f32 %v561, %v573
    %v633 = vadd.f32 %v562, %v573
    %v634 = vadd.f32 %v563, %v573
    %v635 = vadd.f32 %v564, %v573
    %v636 = vadd.f32 %v565, %v573
    %v637 = vadd.f32 %v566, %v573
    %v638 = vadd.f32 %v567, %v573
    %639 = vst.msk [vmem:[#allocation5] sm:$0xff] %vm96, %v575
    %640 = vst.msk [vmem:[#allocation5 + $0x8] sm:$0xff] %vm96, %v576
    %641 = vst.msk [vmem:[#allocation5 + $0x10] sm:$0xff] %vm96, %v577
    %642 = vst.msk [vmem:[#allocation5 + $0x18] sm:$0xff] %vm96, %v578
    %643 = vst.msk [vmem:[#allocation5 + $0x20] sm:$0xff] %vm96, %v579
    %644 = vst.msk [vmem:[#allocation5 + $0x28] sm:$0xff] %vm96, %v580
    %645 = vst.msk [vmem:[#allocation5 + $0x30] sm:$0xff] %vm96, %v581
    %646 = vst.msk [vmem:[#allocation5 + $0x38] sm:$0xff] %vm96, %v582
    %647 = vst.msk [vmem:[#allocation5 + $0x40] sm:$0xff] %vm96, %v583
    %648 = vst.msk [vmem:[#allocation5 + $0x48] sm:$0xff] %vm96, %v584
    %649 = vst.msk [vmem:[#allocation5 + $0x50] sm:$0xff] %vm96, %v585
    %650 = vst.msk [vmem:[#allocation5 + $0x58] sm:$0xff] %vm96, %v586
    %651 = vst.msk [vmem:[#allocation5 + $0x60] sm:$0xff] %vm96, %v587
    %652 = vst.msk [vmem:[#allocation5 + $0x68] sm:$0xff] %vm96, %v588
    %653 = vst.msk [vmem:[#allocation5 + $0x70] sm:$0xff] %vm96, %v589
    %654 = vst.msk [vmem:[#allocation5 + $0x78] sm:$0xff] %vm96, %v590
    %655 = vst.msk [vmem:[#allocation5 + $0x80] sm:$0xff] %vm96, %v591
    %656 = vst.msk [vmem:[#allocation5 + $0x88] sm:$0xff] %vm96, %v592
    %657 = vst.msk [vmem:[#allocation5 + $0x90] sm:$0xff] %vm96, %v593
    %658 = vst.msk [vmem:[#allocation5 + $0x98] sm:$0xff] %vm96, %v594
    %659 = vst.msk [vmem:[#allocation5 + $0xa0] sm:$0xff] %vm96, %v595
    %660 = vst.msk [vmem:[#allocation5 + $0xa8] sm:$0xff] %vm96, %v596
    %661 = vst.msk [vmem:[#allocation5 + $0xb0] sm:$0xff] %vm96, %v597
    %662 = vst.msk [vmem:[#allocation5 + $0xb8] sm:$0xff] %vm96, %v598
    %663 = vst.msk [vmem:[#allocation5 + $0xc0] sm:$0xff] %vm96, %v599
    %664 = vst.msk [vmem:[#allocation5 + $0xc8] sm:$0xff] %vm96, %v600
    %665 = vst.msk [vmem:[#allocation5 + $0xd0] sm:$0xff] %vm96, %v601
    %666 = vst.msk [vmem:[#allocation5 + $0xd8] sm:$0xff] %vm96, %v602
    %667 = vst.msk [vmem:[#allocation5 + $0xe0] sm:$0xff] %vm96, %v603
    %668 = vst.msk [vmem:[#allocation5 + $0xe8] sm:$0xff] %vm96, %v604
    %669 = vst.msk [vmem:[#allocation5 + $0xf0] sm:$0xff] %vm96, %v605
    %670 = vst.msk [vmem:[#allocation5 + $0xf8] sm:$0xff] %vm96, %v606
    %671 = vst.msk [vmem:[#allocation5 + $0x100] sm:$0xff] %vm96, %v607
    %672 = vst.msk [vmem:[#allocation5 + $0x108] sm:$0xff] %vm96, %v608
    %673 = vst.msk [vmem:[#allocation5 + $0x110] sm:$0xff] %vm96, %v609
    %674 = vst.msk [vmem:[#allocation5 + $0x118] sm:$0xff] %vm96, %v610
    %675 = vst.msk [vmem:[#allocation5 + $0x120] sm:$0xff] %vm96, %v611
    %676 = vst.msk [vmem:[#allocation5 + $0x128] sm:$0xff] %vm96, %v612
    %677 = vst.msk [vmem:[#allocation5 + $0x130] sm:$0xff] %vm96, %v613
    %678 = vst.msk [vmem:[#allocation5 + $0x138] sm:$0xff] %vm96, %v614
    %679 = vst.msk [vmem:[#allocation5 + $0x140] sm:$0xff] %vm96, %v615
    %680 = vst.msk [vmem:[#allocation5 + $0x148] sm:$0xff] %vm96, %v616
    %681 = vst.msk [vmem:[#allocation5 + $0x150] sm:$0xff] %vm96, %v617
    %682 = vst.msk [vmem:[#allocation5 + $0x158] sm:$0xff] %vm96, %v618
    %683 = vst.msk [vmem:[#allocation5 + $0x160] sm:$0xff] %vm96, %v619
    %684 = vst.msk [vmem:[#allocation5 + $0x168] sm:$0xff] %vm96, %v620
    %685 = vst.msk [vmem:[#allocation5 + $0x170] sm:$0xff] %vm96, %v621
    %686 = vst.msk [vmem:[#allocation5 + $0x178] sm:$0xff] %vm96, %v622
    %687 = vst.msk [vmem:[#allocation5 + $0x180] sm:$0xff] %vm96, %v623
    %688 = vst.msk [vmem:[#allocation5 + $0x188] sm:$0xff] %vm96, %v624
    %689 = vst.msk [vmem:[#allocation5 + $0x190] sm:$0xff] %vm96, %v625
    %690 = vst.msk [vmem:[#allocation5 + $0x198] sm:$0xff] %vm96, %v626
    %691 = vst.msk [vmem:[#allocation5 + $0x1a0] sm:$0xff] %vm96, %v627
    %692 = vst.msk [vmem:[#allocation5 + $0x1a8] sm:$0xff] %vm96, %v628
    %693 = vst.msk [vmem:[#allocation5 + $0x1b0] sm:$0xff] %vm96, %v629
    %694 = vst.msk [vmem:[#allocation5 + $0x1b8] sm:$0xff] %vm96, %v630
    %695 = vst.msk [vmem:[#allocation5 + $0x1c0] sm:$0xff] %vm96, %v631
    %696 = vst.msk [vmem:[#allocation5 + $0x1c8] sm:$0xff] %vm96, %v632
    %697 = vst.msk [vmem:[#allocation5 + $0x1d0] sm:$0xff] %vm96, %v633
    %698 = vst.msk [vmem:[#allocation5 + $0x1d8] sm:$0xff] %vm96, %v634
    %699 = vst.msk [vmem:[#allocation5 + $0x1e0] sm:$0xff] %vm96, %v635
    %700 = vst.msk [vmem:[#allocation5 + $0x1e8] sm:$0xff] %vm96, %v636
    %701 = vst.msk [vmem:[#allocation5 + $0x1f0] sm:$0xff] %vm96, %v637
    %702 = vst.msk [vmem:[#allocation5 + $0x1f8] sm:$0xff] %vm96, %v638
    %vm703 = vcmask 253952
    %704 = vst.msk [vmem:[%s4] sm:$0x1] %vm703, %v230
    %705 = vst.msk [vmem:[%s5] sm:$0x1] %vm703, %v493
    // Predicated region
    $region18: #{custom_batch_norm.1} parent=1 // pred_check
      _
    $region19: #{custom_batch_norm.1} parent=1 // pred_check_branch
      %707 = sbr.rel (0) target = $region21
    $region20: #{custom_batch_norm.1} parent=1 // pred_region
      %s709 = ssub.s32 8192, 8192
      %710 = vsyncadd [#allocation4], %s709
      %s711 = sshll.u32 [#allocation5], 4
      %s712 = int_to_ptr.vmem [resolvable:$true] %s711
      %717 = dma.vmem_to_hbm [thread:$0]  %s712, 8192, %s3, [#allocation4], 128, 128, 8
    $region21: #{custom_batch_norm.1} parent=1 // pred_fallthru
      _
    // Predicated region
    $region22: #{custom_batch_norm.1} parent=1 // pred_check
      _
    $region23: #{custom_batch_norm.1} parent=1 // pred_check_branch
      %719 = sbr.rel (0) target = $region25
    $region24: #{custom_batch_norm.1} parent=1 // pred_region
      _
    $region25: #{custom_batch_norm.1} parent=1 // pred_fallthru
      _
    // Predicated region
    $region26: #{custom_batch_norm.1} parent=1 // pred_check
      _
    $region27: #{custom_batch_norm.1} parent=1 // pred_check_branch
      %721 = sbr.rel (0) target = $region29
    $region28: #{custom_batch_norm.1} parent=1 // pred_region
      _
    $region29: #{custom_batch_norm.1} parent=1 // pred_fallthru
      _
    // Predicated region
    $region30: #{custom_batch_norm.1} parent=1 // pred_check
      _
    $region31: #{custom_batch_norm.1} parent=1 // pred_check_branch
      %723 = sbr.rel (0) target = $region33
    $region32: #{custom_batch_norm.1} parent=1 // pred_region
      %724 = dma.done [#allocation4], 8192
    $region33: #{custom_batch_norm.1} parent=1 // pred_fallthru
      _
    // Predicated region
    $region34: #{custom_batch_norm.1} parent=1 // pred_check
      _
    $region35: #{custom_batch_norm.1} parent=1 // pred_check_branch
      %726 = sbr.rel (0) target = $region37
    $region36: #{custom_batch_norm.1} parent=1 // pred_region
      _
    $region37: #{custom_batch_norm.1} parent=1 // pred_fallthru
      _
    // Predicated region
    $region38: #{custom_batch_norm.1} parent=1 // pred_check
      _
    $region39: #{custom_batch_norm.1} parent=1 // pred_check_branch
      %728 = sbr.rel (0) target = $region41
    $region40: #{custom_batch_norm.1} parent=1 // pred_region
      _
    $region41: #{custom_batch_norm.1} parent=1 // pred_fallthru
      _
    %729 = vsyncpa [#allocation3], 1
    %730 = vsyncpa [#allocation4], 1

</llo_original>
